<compile_context>
chip_gen: v5e
topology: v5e:2x2
jax: 0.10.0
libtpu: 0.0.40
codegen_flags: <defaults>
</compile_context>

<pallas_src>
import functools

import jax
import jax.numpy as jnp
from jax.experimental import pallas as pl
from jax.experimental.pallas import tpu as pltpu


_LANE = 128
_SUBLANE = 8
_MIB = 1024 * 1024


def _round_up(x, m):
    return ((x + m - 1) // m) * m


def _cdiv(a, b):
    return (a + b - 1) // b


def _tpu_caps():
    """Returns (per-core VMEM bytes, device has two TensorCores)."""
    vmem_bytes = 64 * _MIB  # conservative default (v7x per-TC VMEM)
    try:
        info = pltpu.get_tpu_info()
        vmem_bytes = int(getattr(info, "vmem_capacity_bytes", vmem_bytes))
    except Exception:
        pass
    kind = ""
    try:
        kind = jax.devices()[0].device_kind.lower()
    except Exception:
        pass
    two_cores = "v7" in kind
    if two_cores:
        # get_tpu_info may report chip-level VMEM; stay inside one TC's 64 MiB.
        vmem_bytes = min(vmem_bytes, 64 * _MIB)
    return vmem_bytes, two_cores


def _global_pool_kernel(x_ref, o_ref, acc_ref, *, pool_type, hw, chunk_hw,
                        num_k, core_split, k_offset_core1, skip_dup, inv_hw):
    # x_ref: (tile_r, chunk_hw) native dtype; acc_ref: (tile_r, 1) f32.
    # o_ref: (tile_r, 1) out dtype (standard path) or f32 partial sums
    #        (core-split path, finalized in the wrapper).
    k = pl.program_id(1)

    @pl.when(k == 0)
    def _():
        acc_ref[...] = jnp.zeros_like(acc_ref)

    if core_split:
        cc = pl.program_id(0)
        logical_k = cc * k_offset_core1 + k
    else:
        logical_k = k

    x = x_ref[...]
    if pool_type == "rms":
        xr = x.astype(jnp.float32)
        xr = xr * xr
    elif pool_type == "abs":
        # Matches the PyTorch branch: plain mean (despite the name).
        xr = x.astype(jnp.float32)
    else:
        # Default: mean of |x|.  abs in native dtype is exact and cheaper
        # for packed 16-bit inputs.
        xr = jnp.abs(x).astype(jnp.float32)

    needs_mask = (num_k * chunk_hw) != hw  # static: only if a tail chunk exists

    def _accum_full():
        acc_ref[...] += jnp.sum(xr, axis=-1, keepdims=True)

    def _accum_masked(start):
        cols = start + jax.lax.broadcasted_iota(jnp.int32, xr.shape, xr.ndim - 1)
        vals = jnp.where(cols < hw, xr, 0.0)
        acc_ref[...] += jnp.sum(vals, axis=-1, keepdims=True)

    def _do_accum():
        if needs_mask:
            start = logical_k * chunk_hw
            is_full = (start + chunk_hw) <= hw

            @pl.when(is_full)
            def _():
                _accum_full()

            @pl.when(jnp.logical_not(is_full))
            def _():
                _accum_masked(start)
        else:
            _accum_full()

    if core_split and skip_dup:
        # Odd chunk count: core 1's first chunk duplicates one of core 0's.
        dup = jnp.logical_and(pl.program_id(0) == 1, k == 0)

        @pl.when(jnp.logical_not(dup))
        def _():
            _do_accum()
    else:
        _do_accum()

    @pl.when(k == pl.num_programs(1) - 1)
    def _():
        if core_split:
            o_ref[...] = acc_ref[...]          # raw f32 partial sums
        else:
            m = acc_ref[...] * inv_hw
            if pool_type == "rms":
                # rsqrt lowers to the EUP; all-zero rows yield inf like torch.
                m = jax.lax.rsqrt(m)
            o_ref[...] = m.astype(o_ref.dtype)


def global_pooling(x, pool_type: str = "mean", keep_dim: bool = False, *,
                   num_cores=None, _target_block_bytes=None):
    """Global pooling over the last two (spatial) dims of an NCHW tensor."""
    assert x.ndim == 4, f"Got: {x.shape}"
    n, c, h, w = x.shape
    rows = n * c
    hw = h * w
    x2d = x.reshape(rows, hw)

    itemsize = jnp.dtype(x.dtype).itemsize
    vmem_bytes, two_cores = _tpu_caps()
    if num_cores is not None:
        two_cores = num_cores >= 2

    vmem_limit = (vmem_bytes * 3) // 4
    if _target_block_bytes is None:
        usable = (vmem_limit * 2) // 3
        # Per-element VMEM cost: double-buffered native input + ~2 f32 temps.
        max_block_elems = usable // (2 * itemsize + 8)
    else:
        max_block_elems = _target_block_bytes // itemsize
    max_block_elems = max(_SUBLANE * _LANE, max_block_elems)

    # ---- lane (H*W) chunking: no padding ------------------------------------
    hw_vmem = _round_up(hw, _LANE)            # lanes the block occupies in VMEM
    if hw_vmem * _SUBLANE <= max_block_elems:
        num_k = 1
        chunk_hw = hw                          # full array dim: exempt from 128
        chunk_vmem = hw_vmem
    else:
        max_chunk = max(_LANE, (max_block_elems // _SUBLANE) // _LANE * _LANE)
        num_k = _cdiv(hw, max_chunk)
        chunk_hw = _round_up(_cdiv(hw, num_k), _LANE)
        num_k = _cdiv(hw, chunk_hw)
        chunk_vmem = chunk_hw

    # ---- row tiling: no padding ----------------------------------------------
    max_rows = max(_SUBLANE,
                   (max_block_elems // chunk_vmem) // _SUBLANE * _SUBLANE)
    if max_rows >= rows:
        tile_r = rows                          # full array dim: exempt from 8
        grid_r = 1
    else:
        tile_r = max_rows                      # multiple of 8; last block partial
        grid_r = _cdiv(rows, tile_r)

    # Keep >= 2 row tiles only on two-TensorCore parts (v7x megacore).
    if two_cores and grid_r == 1 and rows > _SUBLANE:
        split_r = _round_up(_cdiv(rows, 2), _SUBLANE)
        if split_r < rows:
            tile_r = split_r
            grid_r = _cdiv(rows, tile_r)

    inv_hw = 1.0 / float(hw)
    cost = pl.CostEstimate(
        flops=2 * rows * hw,
        transcendentals=rows if pool_type == "rms" else 0,
        bytes_accessed=rows * hw * itemsize + rows * itemsize,
    )
    cparams = pltpu.CompilerParams(
        dimension_semantics=("parallel", "arbitrary"),
        vmem_limit_bytes=int(vmem_limit),
    )

    use_core_split = two_cores and grid_r == 1 and num_k >= 2

    if not use_core_split:
        kernel = functools.partial(
            _global_pool_kernel, pool_type=pool_type, hw=hw, chunk_hw=chunk_hw,
            num_k=num_k, core_split=False, k_offset_core1=0, skip_dup=False,
            inv_hw=inv_hw)
        out2d = pl.pallas_call(
            kernel,
            out_shape=jax.ShapeDtypeStruct((rows, 1), x.dtype),
            grid_spec=pltpu.PrefetchScalarGridSpec(
                num_scalar_prefetch=0,
                grid=(grid_r, num_k),
                in_specs=[pl.BlockSpec((tile_r, chunk_hw), lambda i, k: (i, k))],
                out_specs=pl.BlockSpec((tile_r, 1), lambda i, k: (i, 0)),
                scratch_shapes=[pltpu.VMEM((tile_r, 1), jnp.float32)],
            ),
            compiler_params=cparams,
            cost_estimate=cost,
        )(x2d)
    else:
        # Few rows, huge H*W on a two-core part: split the reduction across
        # cores.  Core 0 handles chunks [0, k_half); core 1 handles the last
        # k_half chunks (its first iteration is skipped if they overlap).
        k_half = _cdiv(num_k, 2)
        k_off = num_k - k_half
        skip_dup = (2 * k_half) != num_k
        kernel = functools.partial(
            _global_pool_kernel, pool_type=pool_type, hw=hw, chunk_hw=chunk_hw,
            num_k=num_k, core_split=True, k_offset_core1=k_off,
            skip_dup=skip_dup, inv_hw=inv_hw)
        partial_sums = pl.pallas_call(
            kernel,
            out_shape=jax.ShapeDtypeStruct((2, rows, 1), jnp.float32),
            grid_spec=pltpu.PrefetchScalarGridSpec(
                num_scalar_prefetch=0,
                grid=(2, k_half),
                in_specs=[pl.BlockSpec((tile_r, chunk_hw),
                                       lambda cc, k: (0, cc * k_off + k))],
                out_specs=pl.BlockSpec((None, tile_r, 1),
                                       lambda cc, k: (cc, 0, 0)),
                scratch_shapes=[pltpu.VMEM((tile_r, 1), jnp.float32)],
            ),
            compiler_params=cparams,
            cost_estimate=cost,
        )(x2d)
        m = (partial_sums[0] + partial_sums[1]) * inv_hw
        if pool_type == "rms":
            m = jax.lax.rsqrt(m)
        out2d = m.astype(x.dtype)

    if keep_dim:
        return out2d.reshape(n, c, 1, 1)
    return out2d.reshape(n, c)


def _reference(x, pool_type, keep_dim):
    if pool_type == "rms":
        return jnp.mean(x ** 2, axis=(-2, -1), keepdims=keep_dim) ** (-0.5)
    elif pool_type == "abs":
        return jnp.mean(x, axis=(-2, -1), keepdims=keep_dim)
    return jnp.mean(jnp.abs(x), axis=(-2, -1), keepdims=keep_dim)


if __name__ == "__main__":
    key = jax.random.PRNGKey(0)
    ok = True

    cases = [
        # (shape, dtype, extra kwargs)
        ((2, 4, 16, 16), jnp.float32, {}),                       # primary shape
        ((2, 3, 7, 7), jnp.float32, {}),                         # non-aligned, no pad
        ((2, 4, 16, 16), jnp.bfloat16, {}),                      # 16-bit path
        ((4, 15, 9, 9), jnp.float32,                             # multi row-tile,
         {"_target_block_bytes": 4096}),                         #  partial last tile
        ((1, 2, 96, 96), jnp.float32,                            # chunked reduction
         {"_target_block_bytes": 64 * 1024}),                    #  + tail-lane mask
        ((1, 2, 96, 96), jnp.float32,                            # 2-core k-split path
         {"_target_block_bytes": 64 * 1024, "num_cores": 2}),
        ((2, 4, 16, 16), jnp.float32, {"num_cores": 2}),         # 2-core row split
    ]

    for ci, (shape, dtype, kwargs) in enumerate(cases):
        key, sub = jax.random.split(key)
        x = jax.random.normal(sub, shape, dtype=jnp.float32).astype(dtype)
        xf = x.astype(jnp.float32)
        tol = 1e-5 if dtype == jnp.float32 else 2e-2
        keep_dims = (False, True) if ci == 0 else (False,)
        for pool_type in ("mean", "abs", "rms"):
            for keep_dim in keep_dims:
                out = jax.block_until_ready(
                    global_pooling(x, pool_type=pool_type, keep_dim=keep_dim,
                                   **kwargs))
                ref = _reference(xf, pool_type, keep_dim).astype(dtype)
                good = (out.shape == ref.shape and out.dtype == ref.dtype
                        and bool(jnp.allclose(out.astype(jnp.float32),
                                              ref.astype(jnp.float32),
                                              rtol=tol, atol=tol)))
                if not good:
                    ok = False
                    print(f"MISMATCH shape={shape} dtype={jnp.dtype(dtype).name} "
                          f"pool={pool_type} keep_dim={keep_dim} kwargs={kwargs}")

    if ok:
        print("KERNEL_OK")
</pallas_src>

<mosaic_0001>
module attributes {stable_mosaic.version = 11 : i64} {
  func.func @_global_pool_kernel(%arg0: i32, %arg1: i32, %arg2: memref<8x256xf32, #tpu.memory_space<vmem>>, %arg3: memref<8x1xf32, #tpu.memory_space<vmem>>, %arg4: memref<8x1xf32, #tpu.memory_space<vmem>>) attributes {dimension_semantics = [#tpu.dimension_semantics<parallel>, #tpu.dimension_semantics<arbitrary>], iteration_bounds = array<i64: 1, 1>, scalar_prefetch = 0 : i64, scratch_operands = 1 : i64, tpu.core_type = #tpu.core_type<tc>, window_params = [{transform_indices = @transform_0, window_bounds = array<i64: 8, 256>}, {transform_indices = @transform_1, window_bounds = array<i64: 8, 1>}]} {
    %c0_i32 = arith.constant 0 : i32
    %0 = arith.cmpi eq, %arg1, %c0_i32 : i32
    %1 = arith.extui %0 : i1 to i32
    %c0_i32_0 = arith.constant 0 : i32
    %2 = arith.cmpi ne, %1, %c0_i32_0 : i32
    scf.if %2 {
      %cst_8 = arith.constant 0.000000e+00 : f32
      %13 = vector.broadcast %cst_8 : f32 to vector<8x1xf32>
      %c0_9 = arith.constant 0 : index
      %c0_10 = arith.constant 0 : index
      %14 = vector.load %arg4[%c0_9, %c0_10] : memref<8x1xf32, #tpu.memory_space<vmem>>, vector<8x1xf32>
      tpu.vector_store %arg4[%c0_9, %c0_10], %13 {strides = array<i32>} : memref<8x1xf32, #tpu.memory_space<vmem>>, vector<8x1xf32>,
    } else {
    }
    %c0 = arith.constant 0 : index
    %c0_1 = arith.constant 0 : index
    %3 = vector.load %arg2[%c0, %c0_1] : memref<8x256xf32, #tpu.memory_space<vmem>>, vector<8x256xf32>
    %4 = math.absf %3 : vector<8x256xf32>
    %c0_2 = arith.constant 0 : index
    %c0_3 = arith.constant 0 : index
    %5 = vector.load %arg4[%c0_2, %c0_3] : memref<8x1xf32, #tpu.memory_space<vmem>>, vector<8x1xf32>
    %cst = arith.constant dense<0.000000e+00> : vector<8xf32>
    %6 = vector.multi_reduction <add>, %4, %cst [1] : vector<8x256xf32> to vector<8xf32>
    %7 = vector.shape_cast %6 : vector<8xf32> to vector<8x1xf32>
    %8 = arith.addf %5, %7 : vector<8x1xf32>
    %c0_4 = arith.constant 0 : index
    %c0_5 = arith.constant 0 : index
    %9 = vector.load %arg4[%c0_4, %c0_5] : memref<8x1xf32, #tpu.memory_space<vmem>>, vector<8x1xf32>
    tpu.vector_store %arg4[%c0_4, %c0_5], %8 {strides = array<i32>} : memref<8x1xf32, #tpu.memory_space<vmem>>, vector<8x1xf32>,
    %c0_i32_6 = arith.constant 0 : i32
    %10 = arith.cmpi eq, %arg1, %c0_i32_6 : i32
    %11 = arith.extui %10 : i1 to i32
    %c0_i32_7 = arith.constant 0 : i32
    %12 = arith.cmpi ne, %11, %c0_i32_7 : i32
    scf.if %12 {
      %c0_8 = arith.constant 0 : index
      %c0_9 = arith.constant 0 : index
      %13 = vector.load %arg4[%c0_8, %c0_9] : memref<8x1xf32, #tpu.memory_space<vmem>>, vector<8x1xf32>
      %cst_10 = arith.constant 3.906250e-03 : f32
      %14 = vector.broadcast %cst_10 : f32 to vector<8x1xf32>
      %15 = arith.mulf %13, %14 : vector<8x1xf32>
      %c0_11 = arith.constant 0 : index
      %c0_12 = arith.constant 0 : index
      %16 = vector.load %arg3[%c0_11, %c0_12] : memref<8x1xf32, #tpu.memory_space<vmem>>, vector<8x1xf32>
      tpu.vector_store %arg3[%c0_11, %c0_12], %15 {strides = array<i32>} : memref<8x1xf32, #tpu.memory_space<vmem>>, vector<8x1xf32>,
    } else {
    }
    return
  }
  func.func @transform_0(%arg0: i32, %arg1: i32) -> (i32, i32) {
    %c0_i32 = arith.constant 0 : i32
    return %arg0, %arg1 : i32, i32
  }
  func.func @transform_1(%arg0: i32, %arg1: i32) -> (i32, i32) {
    %c0_i32 = arith.constant 0 : i32
    %c0_i32_0 = arith.constant 0 : i32
    return %arg0, %c0_i32 : i32, i32
  }
}

</mosaic_0001>

<llo_original>
// kernel: tpu_custom_call.1
$region0: #{tpu_custom_call.1}
  #allocation0 [shape = 'u32[]', space=smem, size = 0x4, offset = 0x4, fixed_abs, tag = 'smem constant byte address 0x4 - core index']
  #allocation1 [shape = 'u32[72,128]{1,0:T(1,128)}', space=vmem, size = 0x9000, scoped, tag = 'internal scratch']
  #allocation2 [shape = 'f32[8,1]{1,0:T(8,128)}', space=vmem, size = 0x1000, scoped, tag = 'scratch operand']
  %s0 = inlined_call_operand.hbm [shape: f32[8,256], index: 0, kind: input, shape index: {}]
  %s1 = inlined_call_operand.vmem [shape: f32[8,1], index: 1, kind: output, shape index: {}]
  %s2 = sld [smem:[#allocation0]]
  $region26: #{tpu_custom_call.1} parent=0
    _
  %s4 = ssub.s32 1, %s2
  %s5 = scalar_select 0, %s4, %s2
  $region1: #{tpu_custom_call.1} parent=0
    #allocation3 [shape = 'u8[8192]{0}', space=vmem, size = 0x2000, scoped, tag = 'input window, operand 0, single buffered']
    #allocation4 [shape = 's32[1]{0}', space=sflag, size = 0x4, scoped, tag = 'scoped memory for tpu_custom_call.1']
    %6 = vsyncpa [#allocation4], 0
    // Predicated region
    $region2: #{tpu_custom_call.1} parent=1 // pred_check
      _
    $region3: #{tpu_custom_call.1} parent=1 // pred_check_branch
      %8 = sbr.rel (0) target = $region5
    $region4: #{tpu_custom_call.1} parent=1 // pred_region
      %10 = vsyncadd [#allocation4], 0
      %s12 = sshll.u32 %s0, 4
      %s13 = int_to_ptr.hbm [resolvable:$true] %s12
      %s14 = sshll.u32 [#allocation3], 4
      %s15 = int_to_ptr.vmem [resolvable:$true] %s14
      %17 = dma.hbm_to_vmem [thread:$0]  %s13, 256, %s15, [#allocation4]
    $region5: #{tpu_custom_call.1} parent=1 // pred_fallthru
      _
    // Predicated region
    $region6: #{tpu_custom_call.1} parent=1 // pred_check
      _
    $region7: #{tpu_custom_call.1} parent=1 // pred_check_branch
      %19 = sbr.rel (0) target = $region9
    $region8: #{tpu_custom_call.1} parent=1 // pred_region
      %21 = dma.done [#allocation4], 256
    $region9: #{tpu_custom_call.1} parent=1 // pred_fallthru
      _
    %p22 = scmp.eq.s32.totalorder 0, 0
    // Predicated region
    $region10: #{tpu_custom_call.1} parent=1 // pred_check
      %p23 = pneg %p22
    $region11: #{tpu_custom_call.1} parent=1 // pred_check_branch
      %25 = sbr.rel (%p23) target = $region13
    $region12: #{tpu_custom_call.1} parent=1 // pred_region
      %vm26 = vcmask 7168
      %27 = vst.msk [vmem:[#allocation2] sm:$0xff] %vm26, 0.0
    $region13: #{tpu_custom_call.1} parent=1 // pred_fallthru
      _
    %v28 = vld [vmem:[#allocation3] sm:$0xff]
    %v29 = vld [vmem:[#allocation3 + $0x8] sm:$0xff]
    %v30 = vand.u32 2147483647, %v28
    %v31 = vand.u32 2147483647, %v29
    %v32 = vld [vmem:[#allocation2] sm:$0xff]
    %v33 = vadd.f32 %v30, %v31
    %34 = vadd.xlane.f32.xlu0 %v33
    %v35 = vpop.xlane.xlu0 %34
    %v36 = vadd.f32 %v32, %v35
    %vm37 = vcmask 7168
    %38 = vst.msk [vmem:[#allocation2] sm:$0xff] %vm37, %v36
    // Predicated region
    $region14: #{tpu_custom_call.1} parent=1 // pred_check
      %p39 = pneg %p22
    $region15: #{tpu_custom_call.1} parent=1 // pred_check_branch
      %41 = sbr.rel (%p39) target = $region17
    $region16: #{tpu_custom_call.1} parent=1 // pred_region
      %v42 = vld [vmem:[#allocation2] sm:$0xff]
      %v43 = vmul.f32 %v42, 0.00390625
      %44 = vst.msk [vmem:[%s1] sm:$0xff] %vm37, %v43
    $region17: #{tpu_custom_call.1} parent=1 // pred_fallthru
      _
    // Predicated region
    $region18: #{tpu_custom_call.1} parent=1 // pred_check
      _
    $region19: #{tpu_custom_call.1} parent=1 // pred_check_branch
      %46 = sbr.rel (0) target = $region21
    $region20: #{tpu_custom_call.1} parent=1 // pred_region
      _
    $region21: #{tpu_custom_call.1} parent=1 // pred_fallthru
      _
    // Predicated region
    $region22: #{tpu_custom_call.1} parent=1 // pred_check
      _
    $region23: #{tpu_custom_call.1} parent=1 // pred_check_branch
      %48 = sbr.rel (0) target = $region25
    $region24: #{tpu_custom_call.1} parent=1 // pred_region
      _
    $region25: #{tpu_custom_call.1} parent=1 // pred_fallthru
      _
    %49 = vsyncpa [#allocation4], 1

</llo_original>
